<compile_context>
chip_gen: v6e
topology: v6e:2x2x1
jax: 0.10.0
libtpu: 0.0.40
codegen_flags: <defaults>
</compile_context>

<pallas_src>
import functools

import numpy as np
import jax
import jax.numpy as jnp
from jax import lax
from jax.experimental import pallas as pl
from jax.experimental.pallas import tpu as pltpu

BIG = 1e30            # "masked out" distance sentinel
NEG = -3.0e38         # "masked out" value for max-reduction (old torch_geometric fills empty with 0)
INT_BIG = 2 ** 30
VMEM_LIMIT = 48 * 1024 * 1024    # <= ~48 MB: leaves headroom on v7x (64 MiB physical VMEM per TC)


def _ceil_to(n, m):
    return ((n + m - 1) // m) * m


# --------------------------------------------------------------------------
# Kernel 1: nearest(pos, new_pos, batch, new_batch) -> argmin cluster per node
#   grid = (node row tiles [parallel], cluster col tiles [arbitrary, last])
#   running (best_dist, best_idx) per node carried in VMEM scratch.
#   Distances built transposed (clusters on sublanes, nodes on lanes) so the
#   reductions land directly in a lane-dense (1, TM) vector. Output is (1, Np).
# --------------------------------------------------------------------------
def _nearest_kernel(node_aug_ref, cand_aug_ref, node_b_ref, cand_b_ref,
                    out_ref, best_d, best_i, *, tile_c):
    j = pl.program_id(1)

    @pl.when(j == 0)
    def _():
        best_d[...] = jnp.full(best_d.shape, jnp.inf, best_d.dtype)
        best_i[...] = jnp.zeros(best_i.shape, best_i.dtype)

    node_aug = node_aug_ref[...]                       # (TM, 8)  = [p, 1, 0...]
    cand_aug = cand_aug_ref[...]                       # (TC, 8)  = [-2q, |q|^2, 0...]
    # d[c, n] = -2 q_c . p_n + |q_c|^2   (node norm omitted: constant per column)
    d = lax.dot_general(cand_aug, node_aug, (((1,), (1,)), ((), ())),
                        preferred_element_type=jnp.float32)        # (TC, TM)
    d = jnp.where(cand_b_ref[...] != node_b_ref[...], BIG, d)      # batch mask

    ids = j * tile_c + lax.broadcasted_iota(jnp.int32, d.shape, 0)
    local_min = jnp.min(d, axis=0, keepdims=True)                  # (1, TM)
    local_arg = jnp.min(jnp.where(d <= local_min, ids, INT_BIG),
                        axis=0, keepdims=True)                     # (1, TM)

    upd = local_min < best_d[...]                                  # strict: earlier tile wins ties
    best_i[...] = jnp.where(upd, local_arg, best_i[...])
    best_d[...] = jnp.where(upd, local_min, best_d[...])

    @pl.when(j == pl.num_programs(1) - 1)
    def _():
        out_ref[...] = best_i[...]


def nearest_pallas(pos, new_pos, batch, new_batch, *, tm=512, tc=512):
    N = pos.shape[0]
    C = new_pos.shape[0]
    Np = _ceil_to(N, tm)
    Cp = _ceil_to(C, tc)
    pos = pos.astype(jnp.float32)
    new_pos = new_pos.astype(jnp.float32)
    # center positions to tame cancellation in the -2 q.p + |q|^2 expansion
    ctr = jnp.mean(pos, axis=0)
    pos = pos - ctr
    new_pos = new_pos - ctr

    node_aug = jnp.zeros((Np, 8), jnp.float32)
    node_aug = node_aug.at[:N, :3].set(pos).at[:N, 3].set(1.0)
    q2 = jnp.sum(new_pos * new_pos, axis=1)
    cand_aug = jnp.zeros((Cp, 8), jnp.float32)
    cand_aug = cand_aug.at[:C, :3].set(-2.0 * new_pos).at[:C, 3].set(q2)
    node_b = jnp.full((1, Np), -2, jnp.int32).at[0, :N].set(batch.astype(jnp.int32))
    cand_b = jnp.full((Cp, 1), -1, jnp.int32).at[:C, 0].set(new_batch.astype(jnp.int32))

    grid = (Np // tm, Cp // tc)
    out = pl.pallas_call(
        functools.partial(_nearest_kernel, tile_c=tc),
        grid=grid,
        in_specs=[pl.BlockSpec((tm, 8), lambda i, j: (i, 0)),
                  pl.BlockSpec((tc, 8), lambda i, j: (j, 0)),
                  pl.BlockSpec((1, tm), lambda i, j: (0, i)),
                  pl.BlockSpec((tc, 1), lambda i, j: (j, 0))],
        out_specs=pl.BlockSpec((1, tm), lambda i, j: (0, i)),
        out_shape=jax.ShapeDtypeStruct((1, Np), jnp.int32),
        scratch_shapes=[pltpu.VMEM((1, tm), jnp.float32),
                        pltpu.VMEM((1, tm), jnp.int32)],
        compiler_params=pltpu.CompilerParams(
            dimension_semantics=("parallel", "arbitrary"),
            vmem_limit_bytes=VMEM_LIMIT),
        cost_estimate=pl.CostEstimate(
            flops=int(2 * Np * Cp * 8 + 6 * Np * Cp),
            transcendentals=0,
            bytes_accessed=int(4 * (Np * 8 + Cp * 8 * (Np // tm) + Np + Cp + Np))),
    )(node_aug, cand_aug, node_b, cand_b)
    return out[0, :N]


# --------------------------------------------------------------------------
# Kernel 2: scatter_mean(src, cluster) via one-hot MXU matmul
#   grid = (cluster tiles [parallel, usually 1], node tiles [arbitrary, last])
#   output block is the resident f32 accumulator; ones column appended to src
#   so sums + counts come from the same matmul; divide on the last node tile.
#   Feature axis padded only to a multiple of 8 (Dp=8 for the pos path).
# --------------------------------------------------------------------------
def _scatter_mean_kernel(src_ref, cl_ref, out_ref, *, tile_c, d_real):
    c_idx = pl.program_id(0)
    n_idx = pl.program_id(1)

    @pl.when(n_idx == 0)
    def _():
        out_ref[...] = jnp.zeros(out_ref.shape, out_ref.dtype)

    src = src_ref[...]                                             # (TN, Dp)  col d_real == 1.0
    cl = cl_ref[...]                                               # (TN, 1)
    col_ids = c_idx * tile_c + lax.broadcasted_iota(jnp.int32, (src.shape[0], tile_c), 1)
    onehot = (cl == col_ids).astype(jnp.float32)                   # (TN, TC)
    out_ref[...] += lax.dot_general(onehot, src, (((0,), (0,)), ((), ())),
                                    preferred_element_type=jnp.float32)   # (TC, Dp)

    @pl.when(n_idx == pl.num_programs(1) - 1)
    def _():
        acc = out_ref[...]
        cnt = jnp.maximum(acc[:, d_real:d_real + 1], 1.0)
        out_ref[...] = acc / cnt


def scatter_mean_pallas(src, cluster, num_clusters, *, tile_n=128, max_tile_c=2048):
    N, D = src.shape
    Np = _ceil_to(N, tile_n)
    Dp = _ceil_to(D + 1, 8)                    # 8 for the pos path (D=3): no 128-lane padding waste
    Cp8 = _ceil_to(num_clusters, 8)
    tile_c = min(max_tile_c, Cp8)              # usually a single cluster tile -> src streamed once
    Cp = _ceil_to(Cp8, tile_c)

    src_aug = jnp.zeros((Np, Dp), jnp.float32)
    src_aug = src_aug.at[:N, :D].set(src.astype(jnp.float32)).at[:N, D].set(1.0)
    cl = jnp.full((Np, 1), -1, jnp.int32).at[:N, 0].set(cluster.astype(jnp.int32))

    grid = (Cp // tile_c, Np // tile_n)
    out = pl.pallas_call(
        functools.partial(_scatter_mean_kernel, tile_c=tile_c, d_real=D),
        grid=grid,
        in_specs=[pl.BlockSpec((tile_n, Dp), lambda c, n: (n, 0)),
                  pl.BlockSpec((tile_n, 1), lambda c, n: (n, 0))],
        out_specs=pl.BlockSpec((tile_c, Dp), lambda c, n: (c, 0)),
        out_shape=jax.ShapeDtypeStruct((Cp, Dp), jnp.float32),
        compiler_params=pltpu.CompilerParams(
            dimension_semantics=("parallel", "arbitrary"),
            vmem_limit_bytes=VMEM_LIMIT),
        cost_estimate=pl.CostEstimate(
            flops=int(2 * Np * Cp * Dp + Np * Cp),
            transcendentals=0,
            bytes_accessed=int(4 * ((Np * Dp + Np) * (Cp // tile_c) + Cp * Dp))),
    )(src_aug, cl)
    return out[:num_clusters, :D]


# --------------------------------------------------------------------------
# Kernel 3: scatter_max(x, cluster, dim_size=C)
#   grid = (node tiles [arbitrary]); the full (Cp, Fp) accumulator stays
#   resident in VMEM as the output block. Cluster ids are scalar-prefetched
#   into SMEM; each node row does one dynamic-sublane max-update:
#       out[cl[n], :] = max(out[cl[n], :], x[n, :])
#   => O(1) VPU work per element, x streamed from HBM exactly once.
# --------------------------------------------------------------------------
def _scatter_max_kernel(cl_ref, x_ref, out_ref, *, tile_n):
    n_idx = pl.program_id(0)

    @pl.when(n_idx == 0)
    def _():
        out_ref[...] = jnp.full(out_ref.shape, NEG, out_ref.dtype)

    base = n_idx * tile_n

    def body(r, carry):
        c = cl_ref[base + r]                                       # SMEM scalar read
        row = x_ref[pl.ds(r, 1), :]                                # (1, Fp)
        out_ref[pl.ds(c, 1), :] = jnp.maximum(out_ref[pl.ds(c, 1), :], row)
        return carry

    lax.fori_loop(0, tile_n, body, 0)

    @pl.when(n_idx == pl.num_programs(0) - 1)
    def _():
        res = out_ref[...]
        # old torch_geometric scatter_('max', ...) fills empty clusters with 0
        out_ref[...] = jnp.where(res <= NEG * 0.5, 0.0, res)


def scatter_max_pallas(x, cluster, num_clusters, *, tile_n=128):
    # TODO(synk): the resident (Cp, Fp) accumulator + SMEM cluster table assume a moderate pooled
    #             cluster count (fits VMEM/SMEM); very large Cp would need a cluster-tiled fallback.
    N, F = x.shape
    Np = _ceil_to(N, tile_n)
    Cp = _ceil_to(num_clusters + 1, 8)         # +1 guarantees a dump row for padded nodes
    Fp = _ceil_to(F, 128)

    xp = jnp.zeros((Np, Fp), jnp.float32).at[:N, :F].set(x.astype(jnp.float32))
    cl = jnp.full((Np,), Cp - 1, jnp.int32).at[:N].set(cluster.astype(jnp.int32))

    grid = (Np // tile_n,)
    out = pl.pallas_call(
        functools.partial(_scatter_max_kernel, tile_n=tile_n),
        grid_spec=pltpu.PrefetchScalarGridSpec(
            num_scalar_prefetch=1,
            grid=grid,
            in_specs=[pl.BlockSpec((tile_n, Fp), lambda n, cl_s: (n, 0))],
            out_specs=pl.BlockSpec((Cp, Fp), lambda n, cl_s: (0, 0))),
        out_shape=jax.ShapeDtypeStruct((Cp, Fp), jnp.float32),
        compiler_params=pltpu.CompilerParams(
            dimension_semantics=("arbitrary",),
            vmem_limit_bytes=VMEM_LIMIT),
        cost_estimate=pl.CostEstimate(
            flops=int(2 * Np * Fp),
            transcendentals=0,
            bytes_accessed=int(4 * (Np * Fp + Np + Cp * Fp))),
    )(cl, xp)
    return out[:num_clusters, :F]


# --------------------------------------------------------------------------
# Kernel 4: per-batch KNN over new_pos
#   grid = (query row tiles [parallel], candidate tiles [arbitrary, last]).
#   A running top-k (dist, idx) lives in (tq, 128) VMEM scratch; each candidate
#   tile is merged into it via k iterative argmin passes over the concatenated
#   (tq, 128 + tc) slab -> VMEM is bounded independent of total cluster count
#   (mandatory on v7x's 64 MiB VMEM). Invalid neighbors encoded as index -1.
# --------------------------------------------------------------------------
def _knn_kernel(q_aug_ref, c_aug_ref, q_b_ref, c_b_ref, idx_ref,
                best_d, best_i, *, k, tile_c):
    j = pl.program_id(1)

    @pl.when(j == 0)
    def _():
        best_d[...] = jnp.full(best_d.shape, BIG, best_d.dtype)
        best_i[...] = jnp.full(best_i.shape, -1, best_i.dtype)

    qa = q_aug_ref[...]                                            # (TQ, 8) = [q, 1, 0...]
    ca = c_aug_ref[...]                                            # (TC, 8) = [-2c, |c|^2, 0...]
    d = lax.dot_general(qa, ca, (((1,), (1,)), ((), ())),
                        preferred_element_type=jnp.float32)        # (TQ, TC)
    d = jnp.where(q_b_ref[...] != c_b_ref[...], BIG, d)
    ids = j * tile_c + lax.broadcasted_iota(jnp.int32, d.shape, 1)

    # merge running top-k with this tile's candidates
    dist = jnp.concatenate([best_d[...], d], axis=1)               # (TQ, KP + TC)
    idxs = jnp.concatenate([best_i[...], ids], axis=1)

    nd, ni = [], []
    for _ in range(k):
        mind = jnp.min(dist, axis=1, keepdims=True)                # (TQ, 1)
        sel = jnp.min(jnp.where(dist <= mind, idxs, INT_BIG),
                      axis=1, keepdims=True)                       # (TQ, 1)
        nd.append(mind)
        ni.append(sel)
        dist = jnp.where(idxs == sel, BIG, dist)

    tq, kp = best_d.shape
    if kp > k:
        nd.append(jnp.full((tq, kp - k), BIG, jnp.float32))
        ni.append(jnp.full((tq, kp - k), -1, jnp.int32))
    best_d[...] = jnp.concatenate(nd, axis=1)
    best_i[...] = jnp.concatenate(ni, axis=1)

    @pl.when(j == pl.num_programs(1) - 1)
    def _():
        idx_ref[...] = jnp.where(best_d[...] < BIG * 0.5, best_i[...], -1)


def knn_pallas(new_pos, new_batch, k, *, tq=256, tc=512, kp=128):
    assert k <= kp
    C = new_pos.shape[0]
    Cq = _ceil_to(C, tq)
    Cc = _ceil_to(C, tc)
    new_pos = new_pos.astype(jnp.float32)
    ctr = jnp.mean(new_pos, axis=0)
    new_pos = new_pos - ctr

    q_aug = jnp.zeros((Cq, 8), jnp.float32)
    q_aug = q_aug.at[:C, :3].set(new_pos).at[:C, 3].set(1.0)
    n2 = jnp.sum(new_pos * new_pos, axis=1)
    c_aug = jnp.zeros((Cc, 8), jnp.float32)
    c_aug = c_aug.at[:C, :3].set(-2.0 * new_pos).at[:C, 3].set(n2)
    qb = jnp.full((Cq, 1), -2, jnp.int32).at[:C, 0].set(new_batch.astype(jnp.int32))
    cb = jnp.full((1, Cc), -1, jnp.int32).at[0, :C].set(new_batch.astype(jnp.int32))

    grid = (Cq // tq, Cc // tc)
    idx = pl.pallas_call(
        functools.partial(_knn_kernel, k=k, tile_c=tc),
        grid=grid,
        in_specs=[pl.BlockSpec((tq, 8), lambda i, j: (i, 0)),
                  pl.BlockSpec((tc, 8), lambda i, j: (j, 0)),
                  pl.BlockSpec((tq, 1), lambda i, j: (i, 0)),
                  pl.BlockSpec((1, tc), lambda i, j: (0, j))],
        out_specs=pl.BlockSpec((tq, kp), lambda i, j: (i, 0)),
        out_shape=jax.ShapeDtypeStruct((Cq, kp), jnp.int32),
        scratch_shapes=[pltpu.VMEM((tq, kp), jnp.float32),
                        pltpu.VMEM((tq, kp), jnp.int32)],
        compiler_params=pltpu.CompilerParams(
            dimension_semantics=("parallel", "arbitrary"),
            vmem_limit_bytes=VMEM_LIMIT),
        cost_estimate=pl.CostEstimate(
            flops=int(2 * Cq * Cc * 8 + 4 * k * Cq * (Cc + kp)),
            transcendentals=0,
            bytes_accessed=int(4 * (Cq * 8 + Cc * 8 * (Cq // tq) + Cq + Cc + Cq * kp))),
    )(q_aug, c_aug, qb, cb)
    return idx[:C, :k]


# --------------------------------------------------------------------------
# Eager glue: voxel_grid + consecutive_cluster (dynamic #clusters -> NumPy)
# --------------------------------------------------------------------------
def voxel_consecutive_cluster(pos, batch, pool_rad):
    pos = np.asarray(pos, dtype=np.float64)
    batch = np.asarray(batch, dtype=np.int64)
    start = pos.min(axis=0) - pool_rad * 0.5
    end = pos.max(axis=0) + pool_rad * 0.5
    coords = np.floor((pos - start) / pool_rad).astype(np.int64)
    num = np.floor((end - start) / pool_rad).astype(np.int64) + 1
    lin = (coords[:, 0]
           + coords[:, 1] * num[0]
           + coords[:, 2] * num[0] * num[1]
           + batch * num[0] * num[1] * num[2])
    uniq, inv = np.unique(lin, return_inverse=True)
    perm = np.zeros(uniq.shape[0], dtype=np.int64)
    perm[inv] = np.arange(inv.shape[0])                 # representative node per cluster
    return inv.astype(np.int32), perm, int(uniq.shape[0])


# --------------------------------------------------------------------------
# GraphPooling module (forward pass)
# --------------------------------------------------------------------------
class GraphPoolingPallas:
    def __init__(self, pool_rad, n_neigh=9, rad_neigh=0.1, knn=True,
                 self_loop=True, aggr='max', edge_attr=None, flow='source_to_target'):
        self.pool_rad = pool_rad
        self.n_neigh = n_neigh
        self.rad_neigh = rad_neigh
        self.knn = knn
        self.self_loop = self_loop
        self.flow = flow
        self.edge_attr = edge_attr
        aggr = aggr.strip().lower()
        if aggr == 'max':
            self._aggr = 'max'
        elif aggr == 'avg':
            self._aggr = 'mean'
        else:
            raise RuntimeError('Invalid aggregation method in Graph Pooling Layer')
        if self.knn is False:
            # TODO(synk): RadiusGraph branch of GraphReg not implemented (knn=True is the module default).
            raise NotImplementedError
        assert edge_attr is None  # default path: no Cartesian/Spherical edge attrs

    def __call__(self, x, pos, batch):
        # 1) voxel clustering + consecutive relabel (host glue, dynamic cluster count)
        cluster_vox, perm, C = voxel_consecutive_cluster(pos, batch, self.pool_rad)
        cluster_vox = jnp.asarray(cluster_vox)
        # 2) mean position per voxel cluster (Pallas)
        new_pos = scatter_mean_pallas(pos, cluster_vox, C)
        # 3) batch of representative node per cluster
        new_batch = jnp.asarray(np.asarray(batch)[perm]).astype(jnp.int32)
        # 4) reassign each node to nearest pooled position within its batch (Pallas)
        cluster = nearest_pallas(pos, new_pos, jnp.asarray(batch), new_batch)
        # 5) aggregate features per cluster (Pallas)
        if self._aggr == 'max':
            new_x = scatter_max_pallas(x, cluster, C)
        else:
            new_x = scatter_mean_pallas(x, cluster, C)
        # 6) GraphReg: rebuild KNN graph on pooled nodes (Pallas distances + running top-k)
        k_query = self.n_neigh if self.self_loop else self.n_neigh + 1
        nbr_idx = knn_pallas(new_pos, new_batch, k_query)
        nbr = np.asarray(nbr_idx)                          # (C, k), -1 = invalid
        src = nbr.reshape(-1).astype(np.int32)             # neighbor (source)
        tgt = np.repeat(np.arange(C, dtype=np.int32), k_query)   # query node (target)
        keep = src >= 0
        if not self.self_loop:
            keep &= (src != tgt)
        if self.flow == 'source_to_target':
            edge_index = np.stack([src[keep], tgt[keep]], axis=0)
        else:
            edge_index = np.stack([tgt[keep], src[keep]], axis=0)
        return {
            'x': new_x,
            'pos': new_pos,
            'batch': new_batch,
            'edge_index': jnp.asarray(edge_index.astype(np.int32)),
            'edge_attr': None,
        }


if __name__ == "__main__":
    key = jax.random.PRNGKey(0)
    N, F, B = 64, 16, 2
    k_pos, k_feat = jax.random.split(key)
    pos = jax.random.uniform(k_pos, (N, 3), dtype=jnp.float32)
    x = jax.random.normal(k_feat, (N, F), dtype=jnp.float32)
    batch = jnp.repeat(jnp.arange(B, dtype=jnp.int32), N // B)

    model = GraphPoolingPallas(pool_rad=0.3, n_neigh=3, knn=True,
                               self_loop=True, aggr='max')
    out = model(x, pos, batch)
    jax.block_until_ready((out['x'], out['pos'], out['batch'], out['edge_index']))
    assert out['x'].shape[0] == out['pos'].shape[0] == out['batch'].shape[0]
    assert out['edge_index'].shape[0] == 2
    print("KERNEL_OK")
</pallas_src>

<mosaic_0001>
module attributes {stable_mosaic.version = 11 : i64} {
  func.func @_scatter_mean_kernel(%arg0: i32, %arg1: i32, %arg2: memref<128x8xf32, #tpu.memory_space<vmem>>, %arg3: memref<128x1xi32, #tpu.memory_space<vmem>>, %arg4: memref<56x8xf32, #tpu.memory_space<vmem>>) attributes {dimension_semantics = [#tpu.dimension_semantics<parallel>, #tpu.dimension_semantics<arbitrary>], iteration_bounds = array<i64: 1, 1>, scalar_prefetch = 0 : i64, scratch_operands = 0 : i64, tpu.core_type = #tpu.core_type<tc>, window_params = [{transform_indices = @transform_0, window_bounds = array<i64: 128, 8>}, {transform_indices = @transform_1, window_bounds = array<i64: 128, 1>}, {transform_indices = @transform_2, window_bounds = array<i64: 56, 8>}]} {
    %c0_i32 = arith.constant 0 : i32
    %0 = arith.cmpi eq, %arg1, %c0_i32 : i32
    %1 = arith.extui %0 : i1 to i32
    %c0_i32_0 = arith.constant 0 : i32
    %2 = arith.cmpi ne, %1, %c0_i32_0 : i32
    scf.if %2 {
      %cst_10 = arith.constant 0.000000e+00 : f32
      %20 = vector.broadcast %cst_10 : f32 to vector<56x8xf32>
      %c0_11 = arith.constant 0 : index
      %c0_12 = arith.constant 0 : index
      %21 = vector.load %arg4[%c0_11, %c0_12] : memref<56x8xf32, #tpu.memory_space<vmem>>, vector<56x8xf32>
      tpu.vector_store %arg4[%c0_11, %c0_12], %20 {strides = array<i32>} : memref<56x8xf32, #tpu.memory_space<vmem>>, vector<56x8xf32>,
    } else {
    }
    %c0 = arith.constant 0 : index
    %c0_1 = arith.constant 0 : index
    %3 = vector.load %arg2[%c0, %c0_1] : memref<128x8xf32, #tpu.memory_space<vmem>>, vector<128x8xf32>
    %c0_2 = arith.constant 0 : index
    %c0_3 = arith.constant 0 : index
    %4 = vector.load %arg3[%c0_2, %c0_3] : memref<128x1xi32, #tpu.memory_space<vmem>>, vector<128x1xi32>
    %c56_i32 = arith.constant 56 : i32
    %5 = arith.muli %arg0, %c56_i32 : i32
    %6 = tpu.iota {dimensions = array<i32: 1>} : vector<128x56xi32>
    %7 = vector.broadcast %5 : i32 to vector<128x56xi32>
    %8 = arith.addi %7, %6 : vector<128x56xi32>
    %9 = vector.broadcast %4 : vector<128x1xi32> to vector<128x56xi32>
    %10 = arith.cmpi eq, %9, %8 : vector<128x56xi32>
    %11 = arith.extui %10 : vector<128x56xi1> to vector<128x56xi32>
    %12 = arith.sitofp %11 : vector<128x56xi32> to vector<128x56xf32>
    %c0_4 = arith.constant 0 : index
    %c0_5 = arith.constant 0 : index
    %13 = vector.load %arg4[%c0_4, %c0_5] : memref<56x8xf32, #tpu.memory_space<vmem>>, vector<56x8xf32>
    %cst = arith.constant dense<0.000000e+00> : vector<56x8xf32>
    %14 = tpu.matmul %12, %3, %cst {dimension_numbers = #tpu.dot_dimension_numbers<[0], [0], [1], [1], [0, 1, 1, 1], [], []>} : vector<128x56xf32>, vector<128x8xf32>, vector<56x8xf32> -> vector<56x8xf32>
    %15 = arith.addf %13, %14 : vector<56x8xf32>
    %c0_6 = arith.constant 0 : index
    %c0_7 = arith.constant 0 : index
    %16 = vector.load %arg4[%c0_6, %c0_7] : memref<56x8xf32, #tpu.memory_space<vmem>>, vector<56x8xf32>
    tpu.vector_store %arg4[%c0_6, %c0_7], %15 {strides = array<i32>} : memref<56x8xf32, #tpu.memory_space<vmem>>, vector<56x8xf32>,
    %c0_i32_8 = arith.constant 0 : i32
    %17 = arith.cmpi eq, %arg1, %c0_i32_8 : i32
    %18 = arith.extui %17 : i1 to i32
    %c0_i32_9 = arith.constant 0 : i32
    %19 = arith.cmpi ne, %18, %c0_i32_9 : i32
    scf.if %19 {
      %c0_10 = arith.constant 0 : index
      %c0_11 = arith.constant 0 : index
      %20 = vector.load %arg4[%c0_10, %c0_11] : memref<56x8xf32, #tpu.memory_space<vmem>>, vector<56x8xf32>
      %21 = vector.extract_strided_slice %20 {offsets = [0, 3], sizes = [56, 1], strides = [1, 1]} : vector<56x8xf32> to vector<56x1xf32>
      %cst_12 = arith.constant 1.000000e+00 : f32
      %22 = vector.broadcast %cst_12 : f32 to vector<56x1xf32>
      %23 = arith.maximumf %21, %22 : vector<56x1xf32>
      %24 = vector.broadcast %23 : vector<56x1xf32> to vector<56x8xf32>
      %25 = arith.divf %20, %24 : vector<56x8xf32>
      %c0_13 = arith.constant 0 : index
      %c0_14 = arith.constant 0 : index
      %26 = vector.load %arg4[%c0_13, %c0_14] : memref<56x8xf32, #tpu.memory_space<vmem>>, vector<56x8xf32>
      tpu.vector_store %arg4[%c0_13, %c0_14], %25 {strides = array<i32>} : memref<56x8xf32, #tpu.memory_space<vmem>>, vector<56x8xf32>,
    } else {
    }
    return
  }
  func.func @transform_0(%arg0: i32, %arg1: i32) -> (i32, i32) {
    %c0_i32 = arith.constant 0 : i32
    %c0_i32_0 = arith.constant 0 : i32
    return %arg1, %c0_i32 : i32, i32
  }
  func.func @transform_1(%arg0: i32, %arg1: i32) -> (i32, i32) {
    %c0_i32 = arith.constant 0 : i32
    %c0_i32_0 = arith.constant 0 : i32
    return %arg1, %c0_i32 : i32, i32
  }
  func.func @transform_2(%arg0: i32, %arg1: i32) -> (i32, i32) {
    %c0_i32 = arith.constant 0 : i32
    %c0_i32_0 = arith.constant 0 : i32
    return %arg0, %c0_i32 : i32, i32
  }
}

</mosaic_0001>

<llo_original>
// kernel: tpu_custom_call.1
$region0: #{tpu_custom_call.1}
  #allocation0 [shape = 'u32[]', space=smem, size = 0x4, offset = 0x4, fixed_abs, tag = 'smem constant byte address 0x4 - core index']
  #allocation1 [shape = 'u32[144,128]{1,0:T(1,128)}', space=vmem, size = 0x12000, scoped, tag = 'internal scratch']
  %s0 = inlined_call_operand.vmem [shape: f32[128,8], index: 0, kind: input, shape index: {}]
  %s1 = inlined_call_operand.vmem [shape: s32[128,1], index: 1, kind: input, shape index: {}]
  %s2 = inlined_call_operand.vmem [shape: f32[56,8], index: 2, kind: output, shape index: {}]
  %s3 = sld [smem:[#allocation0]]
  $region26: #{tpu_custom_call.1} parent=0
    _
  %s5 = ssub.s32 1, %s3
  %s6 = scalar_select 0, %s5, %s3
  // Predicated region
  $region2: #{tpu_custom_call.1} parent=0 // pred_check
    _
  $region3: #{tpu_custom_call.1} parent=0 // pred_check_branch
    %8 = sbr.rel (0) target = $region5
  $region4: #{tpu_custom_call.1} parent=0 // pred_region
    _
  $region5: #{tpu_custom_call.1} parent=0 // pred_fallthru
    _
  // Predicated region
  $region6: #{tpu_custom_call.1} parent=0 // pred_check
    _
  $region7: #{tpu_custom_call.1} parent=0 // pred_check_branch
    %10 = sbr.rel (0) target = $region9
  $region8: #{tpu_custom_call.1} parent=0 // pred_region
    _
  $region9: #{tpu_custom_call.1} parent=0 // pred_fallthru
    _
  %p11 = scmp.eq.s32.totalorder 0, 0
  // Predicated region
  $region10: #{tpu_custom_call.1} parent=0 // pred_check
    %p12 = pneg %p11
  $region11: #{tpu_custom_call.1} parent=0 // pred_check_branch
    %14 = sbr.rel (%p12) target = $region13
  $region12: #{tpu_custom_call.1} parent=0 // pred_region
    %vm15 = vcmask 64512
    %16 = vst.msk [vmem:[%s2] sm:$0xff] %vm15, 0.0
    %17 = vst.msk [vmem:[%s2 + $0x8] sm:$0xff] %vm15, 0.0
    %18 = vst.msk [vmem:[%s2 + $0x10] sm:$0xff] %vm15, 0.0
    %19 = vst.msk [vmem:[%s2 + $0x18] sm:$0xff] %vm15, 0.0
    %20 = vst.msk [vmem:[%s2 + $0x20] sm:$0xff] %vm15, 0.0
    %21 = vst.msk [vmem:[%s2 + $0x28] sm:$0xff] %vm15, 0.0
    %22 = vst.msk [vmem:[%s2 + $0x30] sm:$0xff] %vm15, 0.0
  $region13: #{tpu_custom_call.1} parent=0 // pred_fallthru
    _
  %v23 = vld [vmem:[%s0] sm:$0xff]
  %v24 = vld [vmem:[%s0 + $0x8] sm:$0xff]
  %v25 = vld [vmem:[%s0 + $0x10] sm:$0xff]
  %v26 = vld [vmem:[%s0 + $0x18] sm:$0xff]
  %v27 = vld [vmem:[%s0 + $0x20] sm:$0xff]
  %v28 = vld [vmem:[%s0 + $0x28] sm:$0xff]
  %v29 = vld [vmem:[%s0 + $0x30] sm:$0xff]
  %v30 = vld [vmem:[%s0 + $0x38] sm:$0xff]
  %v31 = vld [vmem:[%s0 + $0x40] sm:$0xff]
  %v32 = vld [vmem:[%s0 + $0x48] sm:$0xff]
  %v33 = vld [vmem:[%s0 + $0x50] sm:$0xff]
  %v34 = vld [vmem:[%s0 + $0x58] sm:$0xff]
  %v35 = vld [vmem:[%s0 + $0x60] sm:$0xff]
  %v36 = vld [vmem:[%s0 + $0x68] sm:$0xff]
  %v37 = vld [vmem:[%s0 + $0x70] sm:$0xff]
  %v38 = vld [vmem:[%s0 + $0x78] sm:$0xff]
  %v39 = vld [vmem:[%s1] sm:$0xff]
  %v40 = vld [vmem:[%s1 + $0x8] sm:$0xff]
  %v41 = vld [vmem:[%s1 + $0x10] sm:$0xff]
  %v42 = vld [vmem:[%s1 + $0x18] sm:$0xff]
  %v43 = vld [vmem:[%s1 + $0x20] sm:$0xff]
  %v44 = vld [vmem:[%s1 + $0x28] sm:$0xff]
  %v45 = vld [vmem:[%s1 + $0x30] sm:$0xff]
  %v46 = vld [vmem:[%s1 + $0x38] sm:$0xff]
  %v47 = vld [vmem:[%s1 + $0x40] sm:$0xff]
  %v48 = vld [vmem:[%s1 + $0x48] sm:$0xff]
  %v49 = vld [vmem:[%s1 + $0x50] sm:$0xff]
  %v50 = vld [vmem:[%s1 + $0x58] sm:$0xff]
  %v51 = vld [vmem:[%s1 + $0x60] sm:$0xff]
  %v52 = vld [vmem:[%s1 + $0x68] sm:$0xff]
  %v53 = vld [vmem:[%s1 + $0x70] sm:$0xff]
  %v54 = vld [vmem:[%s1 + $0x78] sm:$0xff]
  %s55 = smul.u32 0, 56
  %v56 = vlaneseq
  %v57 = vand.u32 %v56, 127
  %v58 = vstv %s55
  %v59 = vadd.s32 %v58, %v57
  %60 = vset.pattern.permute.xlu0 0
  %61 = vperm.xlu0 %60, %v39
  %v62 = vpop.permute.xlu0 %61
  %63 = vset.pattern.permute.xlu0 0
  %64 = vperm.xlu0 %63, %v40
  %v65 = vpop.permute.xlu0 %64
  %66 = vset.pattern.permute.xlu0 0
  %67 = vperm.xlu0 %66, %v41
  %v68 = vpop.permute.xlu0 %67
  %69 = vset.pattern.permute.xlu0 0
  %70 = vperm.xlu0 %69, %v42
  %v71 = vpop.permute.xlu0 %70
  %72 = vset.pattern.permute.xlu0 0
  %73 = vperm.xlu0 %72, %v43
  %v74 = vpop.permute.xlu0 %73
  %75 = vset.pattern.permute.xlu0 0
  %76 = vperm.xlu0 %75, %v44
  %v77 = vpop.permute.xlu0 %76
  %78 = vset.pattern.permute.xlu0 0
  %79 = vperm.xlu0 %78, %v45
  %v80 = vpop.permute.xlu0 %79
  %81 = vset.pattern.permute.xlu0 0
  %82 = vperm.xlu0 %81, %v46
  %v83 = vpop.permute.xlu0 %82
  %84 = vset.pattern.permute.xlu0 0
  %85 = vperm.xlu0 %84, %v47
  %v86 = vpop.permute.xlu0 %85
  %87 = vset.pattern.permute.xlu0 0
  %88 = vperm.xlu0 %87, %v48
  %v89 = vpop.permute.xlu0 %88
  %90 = vset.pattern.permute.xlu0 0
  %91 = vperm.xlu0 %90, %v49
  %v92 = vpop.permute.xlu0 %91
  %93 = vset.pattern.permute.xlu0 0
  %94 = vperm.xlu0 %93, %v50
  %v95 = vpop.permute.xlu0 %94
  %96 = vset.pattern.permute.xlu0 0
  %97 = vperm.xlu0 %96, %v51
  %v98 = vpop.permute.xlu0 %97
  %99 = vset.pattern.permute.xlu0 0
  %100 = vperm.xlu0 %99, %v52
  %v101 = vpop.permute.xlu0 %100
  %102 = vset.pattern.permute.xlu0 0
  %103 = vperm.xlu0 %102, %v53
  %v104 = vpop.permute.xlu0 %103
  %105 = vset.pattern.permute.xlu0 0
  %106 = vperm.xlu0 %105, %v54
  %v107 = vpop.permute.xlu0 %106
  %vm108 = vcmp.eq.s32.totalorder %v62, %v59
  %vm109 = vcmp.eq.s32.totalorder %v65, %v59
  %vm110 = vcmp.eq.s32.totalorder %v68, %v59
  %vm111 = vcmp.eq.s32.totalorder %v71, %v59
  %vm112 = vcmp.eq.s32.totalorder %v74, %v59
  %vm113 = vcmp.eq.s32.totalorder %v77, %v59
  %vm114 = vcmp.eq.s32.totalorder %v80, %v59
  %vm115 = vcmp.eq.s32.totalorder %v83, %v59
  %vm116 = vcmp.eq.s32.totalorder %v86, %v59
  %vm117 = vcmp.eq.s32.totalorder %v89, %v59
  %vm118 = vcmp.eq.s32.totalorder %v92, %v59
  %vm119 = vcmp.eq.s32.totalorder %v95, %v59
  %vm120 = vcmp.eq.s32.totalorder %v98, %v59
  %vm121 = vcmp.eq.s32.totalorder %v101, %v59
  %vm122 = vcmp.eq.s32.totalorder %v104, %v59
  %vm123 = vcmp.eq.s32.totalorder %v107, %v59
  %v124 = vsel %vm108, 1, 0
  %v125 = vsel %vm109, 1, 0
  %v126 = vsel %vm110, 1, 0
  %v127 = vsel %vm111, 1, 0
  %v128 = vsel %vm112, 1, 0
  %v129 = vsel %vm113, 1, 0
  %v130 = vsel %vm114, 1, 0
  %v131 = vsel %vm115, 1, 0
  %v132 = vsel %vm116, 1, 0
  %v133 = vsel %vm117, 1, 0
  %v134 = vsel %vm118, 1, 0
  %v135 = vsel %vm119, 1, 0
  %v136 = vsel %vm120, 1, 0
  %v137 = vsel %vm121, 1, 0
  %v138 = vsel %vm122, 1, 0
  %v139 = vsel %vm123, 1, 0
  %v140 = vcvt.s32.f32 %v124
  %v141 = vcvt.s32.f32 %v125
  %v142 = vcvt.s32.f32 %v126
  %v143 = vcvt.s32.f32 %v127
  %v144 = vcvt.s32.f32 %v128
  %v145 = vcvt.s32.f32 %v129
  %v146 = vcvt.s32.f32 %v130
  %v147 = vcvt.s32.f32 %v131
  %v148 = vcvt.s32.f32 %v132
  %v149 = vcvt.s32.f32 %v133
  %v150 = vcvt.s32.f32 %v134
  %v151 = vcvt.s32.f32 %v135
  %v152 = vcvt.s32.f32 %v136
  %v153 = vcvt.s32.f32 %v137
  %v154 = vcvt.s32.f32 %v138
  %v155 = vcvt.s32.f32 %v139
  %v156 = vld [vmem:[%s2] sm:$0xff]
  %v157 = vld [vmem:[%s2 + $0x8] sm:$0xff]
  %v158 = vld [vmem:[%s2 + $0x10] sm:$0xff]
  %v159 = vld [vmem:[%s2 + $0x18] sm:$0xff]
  %v160 = vld [vmem:[%s2 + $0x20] sm:$0xff]
  %v161 = vld [vmem:[%s2 + $0x28] sm:$0xff]
  %v162 = vld [vmem:[%s2 + $0x30] sm:$0xff]
  %163 = vxpose.xlu0.b32.start [1/16] %v140, 128
  %164 = vxpose.xlu0.b32.cont [2/16] %v141, 128
  %165 = vxpose.xlu0.b32.cont [3/16] %v142, 128
  %166 = vxpose.xlu0.b32.cont [4/16] %v143, 128
  %167 = vxpose.xlu0.b32.cont [5/16] %v144, 128
  %168 = vxpose.xlu0.b32.cont [6/16] %v145, 128
  %169 = vxpose.xlu0.b32.cont [7/16] %v146, 128
  %170 = vxpose.xlu0.b32.cont [8/16] %v147, 128
  %171 = vxpose.xlu0.b32.cont [9/16] %v148, 128
  %172 = vxpose.xlu0.b32.cont [10/16] %v149, 128
  %173 = vxpose.xlu0.b32.cont [11/16] %v150, 128
  %174 = vxpose.xlu0.b32.cont [12/16] %v151, 128
  %175 = vxpose.xlu0.b32.cont [13/16] %v152, 128
  %176 = vxpose.xlu0.b32.cont [14/16] %v153, 128
  %177 = vxpose.xlu0.b32.cont [15/16] %v154, 128
  %178 = vxpose.xlu0.b32.end [16/16] %v155, 128
  %v179 = vpop.trf.xlu0
  %v180 = vpop.trf.xlu0
  %v181 = vpop.trf.xlu0
  %v182 = vpop.trf.xlu0
  %v183 = vpop.trf.xlu0
  %v184 = vpop.trf.xlu0
  %v185 = vpop.trf.xlu0
  %v186 = vpop.trf.xlu0
  %v187 = vpop.trf.xlu0
  %v188 = vpop.trf.xlu0
  %v189 = vpop.trf.xlu0
  %v190 = vpop.trf.xlu0
  %v191 = vpop.trf.xlu0
  %v192 = vpop.trf.xlu0
  %v193 = vpop.trf.xlu0
  %v194 = vpop.trf.xlu0
  %195 = vmatprep.subr.mxu0 0.0
  %196 = vmatpush1.msra.mxu0 %v38
  %197 = vmatprep.subr.mxu0 0.0
  %198 = vmatpush1.msra.mxu0 %v37
  %199 = vmatprep.subr.mxu0 0.0
  %200 = vmatpush1.msra.mxu0 %v36
  %201 = vmatprep.subr.mxu0 0.0
  %202 = vmatpush1.msra.mxu0 %v35
  %203 = vmatprep.subr.mxu0 0.0
  %204 = vmatpush1.msra.mxu0 %v34
  %205 = vmatprep.subr.mxu0 0.0
  %206 = vmatpush1.msra.mxu0 %v33
  %207 = vmatprep.subr.mxu0 0.0
  %208 = vmatpush1.msra.mxu0 %v32
  %209 = vmatprep.subr.mxu0 0.0
  %210 = vmatpush1.msra.mxu0 %v31
  %211 = vmatprep.subr.mxu0 0.0
  %212 = vmatpush1.msra.mxu0 %v30
  %213 = vmatprep.subr.mxu0 0.0
  %214 = vmatpush1.msra.mxu0 %v29
  %215 = vmatprep.subr.mxu0 0.0
  %216 = vmatpush1.msra.mxu0 %v28
  %217 = vmatprep.subr.mxu0 0.0
  %218 = vmatpush1.msra.mxu0 %v27
  %219 = vmatprep.subr.mxu0 0.0
  %220 = vmatpush1.msra.mxu0 %v26
  %221 = vmatprep.subr.mxu0 0.0
  %222 = vmatpush1.msra.mxu0 %v25
  %223 = vmatprep.subr.mxu0 0.0
  %224 = vmatpush1.msra.mxu0 %v24
  %225 = vmatprep.subr.mxu0 0.0
  %226 = vmatpush1.msra.mxu0 %v23
  %227 = vmatprep.subr.mxu0 0.0
  %228 = vmatpush2.msra.mxu0 0.0
  %229 = vmatprep.subr.mxu0 0.0
  %230 = vmatpush2.msra.mxu0 0.0
  %231 = vmatprep.subr.mxu0 0.0
  %232 = vmatpush2.msra.mxu0 0.0
  %233 = vmatprep.subr.mxu0 0.0
  %234 = vmatpush2.msra.mxu0 0.0
  %235 = vmatprep.subr.mxu0 0.0
  %236 = vmatpush2.msra.mxu0 0.0
  %237 = vmatprep.subr.mxu0 0.0
  %238 = vmatpush2.msra.mxu0 0.0
  %239 = vmatprep.subr.mxu0 0.0
  %240 = vmatpush2.msra.mxu0 0.0
  %241 = vmatprep.subr.mxu0 0.0
  %242 = vmatpush2.msra.mxu0 0.0
  %243 = vmatprep.subr.mxu0 0.0
  %244 = vmatpush2.msra.mxu0 0.0
  %245 = vmatprep.subr.mxu0 0.0
  %246 = vmatpush2.msra.mxu0 0.0
  %247 = vmatprep.subr.mxu0 0.0
  %248 = vmatpush2.msra.mxu0 0.0
  %249 = vmatprep.subr.mxu0 0.0
  %250 = vmatpush2.msra.mxu0 0.0
  %251 = vmatprep.subr.mxu0 0.0
  %252 = vmatpush2.msra.mxu0 0.0
  %253 = vmatprep.subr.mxu0 0.0
  %254 = vmatpush2.msra.mxu0 0.0
  %255 = vmatprep.subr.mxu0 0.0
  %256 = vmatpush2.msra.mxu0 0.0
  %257 = vmatprep.subr.mxu0 0.0
  %258 = vmatpush2.msra.mxu0 0.0
  %259 = vmatprep.mubr.f32.mxu0 0.0
  %260 = vmatmul.mubr.f32.gmra.mxu0 %v179
  %v261 = vpop.f32.mrf.mxu0
  %v262 = vadd.f32 0.0, %v261
  %v263 = vpop.f32.mrf.mxu0
  %264 = vmatprep.mubr.f32.mxu0 0.0
  %265 = vmatmul.mubr.f32.gmra.mxu0 %v180
  %v266 = vpop.f32.mrf.mxu0
  %v267 = vadd.f32 0.0, %v266
  %v268 = vpop.f32.mrf.mxu0
  %269 = vmatprep.mubr.f32.mxu0 0.0
  %270 = vmatmul.mubr.f32.gmra.mxu0 %v181
  %v271 = vpop.f32.mrf.mxu0
  %v272 = vadd.f32 0.0, %v271
  %v273 = vpop.f32.mrf.mxu0
  %274 = vmatprep.mubr.f32.mxu0 0.0
  %275 = vmatmul.mubr.f32.gmra.mxu0 %v182
  %v276 = vpop.f32.mrf.mxu0
  %v277 = vadd.f32 0.0, %v276
  %v278 = vpop.f32.mrf.mxu0
  %279 = vmatprep.mubr.f32.mxu0 0.0
  %280 = vmatmul.mubr.f32.gmra.mxu0 %v183
  %v281 = vpop.f32.mrf.mxu0
  %v282 = vadd.f32 0.0, %v281
  %v283 = vpop.f32.mrf.mxu0
  %284 = vmatprep.mubr.f32.mxu0 0.0
  %285 = vmatmul.mubr.f32.gmra.mxu0 %v184
  %v286 = vpop.f32.mrf.mxu0
  %v287 = vadd.f32 0.0, %v286
  %v288 = vpop.f32.mrf.mxu0
  %289 = vmatprep.mubr.f32.mxu0 0.0
  %290 = vmatmul.mubr.f32.gmra.mxu0 %v185
  %v291 = vpop.f32.mrf.mxu0
  %v292 = vadd.f32 0.0, %v291
  %v293 = vpop.f32.mrf.mxu0
  %294 = vdwg.mxu0
  %v295 = vadd.f32 %v156, %v262
  %v296 = vadd.f32 %v157, %v267
  %v297 = vadd.f32 %v158, %v272
  %v298 = vadd.f32 %v159, %v277
  %v299 = vadd.f32 %v160, %v282
  %v300 = vadd.f32 %v161, %v287
  %v301 = vadd.f32 %v162, %v292
  %vm302 = vcmask 64512
  %303 = vst.msk [vmem:[%s2] sm:$0xff] %vm302, %v295
  %304 = vst.msk [vmem:[%s2 + $0x8] sm:$0xff] %vm302, %v296
  %305 = vst.msk [vmem:[%s2 + $0x10] sm:$0xff] %vm302, %v297
  %306 = vst.msk [vmem:[%s2 + $0x18] sm:$0xff] %vm302, %v298
  %307 = vst.msk [vmem:[%s2 + $0x20] sm:$0xff] %vm302, %v299
  %308 = vst.msk [vmem:[%s2 + $0x28] sm:$0xff] %vm302, %v300
  %309 = vst.msk [vmem:[%s2 + $0x30] sm:$0xff] %vm302, %v301
  // Predicated region
  $region14: #{tpu_custom_call.1} parent=0 // pred_check
    %p310 = pneg %p11
  $region15: #{tpu_custom_call.1} parent=0 // pred_check_branch
    %312 = sbr.rel (%p310) target = $region17
  $region16: #{tpu_custom_call.1} parent=0 // pred_region
    %v313 = vld [vmem:[%s2] sm:$0xff]
    %v314 = vld [vmem:[%s2 + $0x8] sm:$0xff]
    %v315 = vld [vmem:[%s2 + $0x10] sm:$0xff]
    %v316 = vld [vmem:[%s2 + $0x18] sm:$0xff]
    %v317 = vld [vmem:[%s2 + $0x20] sm:$0xff]
    %v318 = vld [vmem:[%s2 + $0x28] sm:$0xff]
    %v319 = vld [vmem:[%s2 + $0x30] sm:$0xff]
    %v320 = vmax.f32 %v313, 1.0
    %v321 = vmax.f32 %v314, 1.0
    %v322 = vmax.f32 %v315, 1.0
    %v323 = vmax.f32 %v316, 1.0
    %v324 = vmax.f32 %v317, 1.0
    %v325 = vmax.f32 %v318, 1.0
    %v326 = vmax.f32 %v319, 1.0
    %328 = vset.pattern.permute.xlu0 3
    %329 = vperm.xlu0 %328, %v320
    %v330 = vpop.permute.xlu0 %329
    %333 = vset.pattern.permute.xlu0 3
    %334 = vperm.xlu0 %333, %v321
    %v335 = vpop.permute.xlu0 %334
    %338 = vset.pattern.permute.xlu0 3
    %339 = vperm.xlu0 %338, %v322
    %v340 = vpop.permute.xlu0 %339
    %343 = vset.pattern.permute.xlu0 3
    %344 = vperm.xlu0 %343, %v323
    %v345 = vpop.permute.xlu0 %344
    %348 = vset.pattern.permute.xlu0 3
    %349 = vperm.xlu0 %348, %v324
    %v350 = vpop.permute.xlu0 %349
    %353 = vset.pattern.permute.xlu0 3
    %354 = vperm.xlu0 %353, %v325
    %v355 = vpop.permute.xlu0 %354
    %358 = vset.pattern.permute.xlu0 3
    %359 = vperm.xlu0 %358, %v326
    %v360 = vpop.permute.xlu0 %359
    %v362 = vrcp.pop %v330
    %v363 = vmul.f32 %v313, %v362
    %v364 = vrcp.pop %v335
    %v365 = vmul.f32 %v314, %v364
    %v366 = vrcp.pop %v340
    %v367 = vmul.f32 %v315, %v366
    %v368 = vrcp.pop %v345
    %v369 = vmul.f32 %v316, %v368
    %v370 = vrcp.pop %v350
    %v371 = vmul.f32 %v317, %v370
    %v372 = vrcp.pop %v355
    %v373 = vmul.f32 %v318, %v372
    %v374 = vrcp.pop %v360
    %v375 = vmul.f32 %v319, %v374
    %376 = vst.msk [vmem:[%s2] sm:$0xff] %vm302, %v363
    %377 = vst.msk [vmem:[%s2 + $0x8] sm:$0xff] %vm302, %v365
    %378 = vst.msk [vmem:[%s2 + $0x10] sm:$0xff] %vm302, %v367
    %379 = vst.msk [vmem:[%s2 + $0x18] sm:$0xff] %vm302, %v369
    %380 = vst.msk [vmem:[%s2 + $0x20] sm:$0xff] %vm302, %v371
    %381 = vst.msk [vmem:[%s2 + $0x28] sm:$0xff] %vm302, %v373
    %382 = vst.msk [vmem:[%s2 + $0x30] sm:$0xff] %vm302, %v375
  $region17: #{tpu_custom_call.1} parent=0 // pred_fallthru
    _
  // Predicated region
  $region18: #{tpu_custom_call.1} parent=0 // pred_check
    _
  $region19: #{tpu_custom_call.1} parent=0 // pred_check_branch
    %384 = sbr.rel (0) target = $region21
  $region20: #{tpu_custom_call.1} parent=0 // pred_region
    _
  $region21: #{tpu_custom_call.1} parent=0 // pred_fallthru
    _
  // Predicated region
  $region22: #{tpu_custom_call.1} parent=0 // pred_check
    _
  $region23: #{tpu_custom_call.1} parent=0 // pred_check_branch
    %386 = sbr.rel (0) target = $region25
  $region24: #{tpu_custom_call.1} parent=0 // pred_region
    _
  $region25: #{tpu_custom_call.1} parent=0 // pred_fallthru
    _

</llo_original>
